<compile_context>
chip_gen: v7x
topology: tpu7x:2x2x1
jax: 0.10.0
libtpu: 0.0.40
codegen_flags: <defaults>
</compile_context>

<pallas_src>
import math
from functools import partial

import jax
import jax.numpy as jnp
from jax.experimental import pallas as pl
from jax.experimental.pallas import tpu as pltpu


def _round_up(x, m):
    return ((x + m - 1) // m) * m


def _sublane_pack(itemsize):
    return {4: 8, 2: 16, 1: 32}.get(itemsize, 8)


def _l_chunk(length, num_windows):
    # Chunk of the window-length axis processed per inner step: keeps the
    # interleave temp bounded while giving ~>=512-lane dense stores.
    return max(1, min(length, max(1, 512 // num_windows)))


def _window_kernel_fast(x_ref, o_ref, *, length, stride, num_windows, l_chunk):
    # x_ref: (row_tile, N); o_ref: (row_tile, length*num_windows)  (lane-dense)
    rows = x_ref.shape[0]
    l0 = 0
    while l0 < length:                      # static Python loop (unrolled)
        cl = min(l_chunk, length - l0)
        # num_windows unit-stride slices of the VMEM-resident strip (each
        # input element read from HBM exactly once per row tile).
        pieces = [x_ref[:, w * stride + l0: w * stride + l0 + cl]
                  for w in range(num_windows)]
        stacked = jnp.stack(pieces, axis=-1)            # (rows, cl, W)
        # Flatten on-chip (XLU/VPU are idle here) and store one dense chunk.
        o_ref[:, l0 * num_windows:(l0 + cl) * num_windows] = (
            stacked.reshape(rows, cl * num_windows))
        l0 += cl


def _window_kernel_safe(x_ref, o_ref, *, length, stride, num_windows):
    # Fallback: same lane-dense layout, built only from unit-stride slices and
    # lane concatenation (always lowers).
    for l in range(length):
        row = jnp.concatenate(
            [x_ref[:, w * stride + l: w * stride + l + 1]
             for w in range(num_windows)],
            axis=-1)                                    # (rows, W)
        o_ref[:, l * num_windows:(l + 1) * num_windows] = row


def _row_tile(num_rows, n, length, num_windows, itemsize, l_chunk):
    """Row-tile size + vmem limit from PADDED tile footprints and real VMEM."""
    pack = _sublane_pack(itemsize)
    lanes_in = _round_up(n, 128)
    lanes_out = _round_up(length * num_windows, 128)
    lanes_tmp = (_round_up(l_chunk, pack) * _round_up(num_windows, 128)
                 + _round_up(l_chunk * num_windows, 128))
    # double-buffered input + output blocks, plus the per-chunk interleave temp
    per_row = itemsize * (2 * (lanes_in + lanes_out) + lanes_tmp)

    try:
        cap = int(pltpu.get_tpu_info().vmem_capacity_bytes)
    except Exception:
        cap = 64 * 1024 * 1024          # v7x-safe default (64 MiB / TC)
    budget = int(cap * 0.55)            # total per-step footprint target
    vmem_limit = max(32 * 1024 * 1024, int(cap * 0.9))

    tr = max(1, budget // per_row)
    if tr >= num_rows:
        tr = num_rows
    else:
        tr = max(pack, (tr // pack) * pack)
        if tr >= num_rows:
            tr = num_rows
        elif num_rows >= 2 * pack:
            # keep >= 2 grid steps so both v7x TensorCores get work / the
            # input & output DMAs pipeline across steps.
            tr = min(tr, max(pack, _round_up(pl.cdiv(num_rows, 2), pack)))
    return tr, vmem_limit


def _build_call(kernel, rows, n, flat, dtype, tr, vmem_limit):
    return pl.pallas_call(
        kernel,
        out_shape=jax.ShapeDtypeStruct((rows, flat), dtype),
        grid_spec=pltpu.PrefetchScalarGridSpec(
            num_scalar_prefetch=0,
            grid=(pl.cdiv(rows, tr),),
            in_specs=[pl.BlockSpec((tr, n), lambda i: (i, 0))],
            out_specs=pl.BlockSpec((tr, flat), lambda i: (i, 0)),
        ),
        compiler_params=pltpu.CompilerParams(
            dimension_semantics=("parallel",),          # rows are independent
            vmem_limit_bytes=vmem_limit,
        ),
    )


def window_forward(x, length, stride, dim=-1):
    """Pallas equivalent of Window(length, stride).forward(x) with defaults
    (adjust_length=0, transformation=identity, clone=True)."""
    if stride < 1:
        raise ValueError("stride must be >= 1 for the single-call forward pass")
    x = jnp.asarray(x)
    d = dim % x.ndim
    xm = jnp.moveaxis(x, d, -1)              # sliding dim -> lanes (no-op for dim=-1)
    lead = xm.shape[:-1]
    n = xm.shape[-1]
    if n < length:
        raise ValueError("not enough data along `dim` to form a single window")
    num_windows = (n - length) // stride + 1

    rows = int(math.prod(lead)) if lead else 1
    x2 = xm.reshape(rows, n)
    flat = length * num_windows

    l_chunk = _l_chunk(length, num_windows)
    tr, vmem_limit = _row_tile(rows, n, length, num_windows,
                               x2.dtype.itemsize, l_chunk)

    fast = _build_call(
        partial(_window_kernel_fast, length=length, stride=stride,
                num_windows=num_windows, l_chunk=l_chunk),
        rows, n, flat, x2.dtype, tr, vmem_limit)
    try:
        out = jax.block_until_ready(fast(x2))
    except Exception:
        # Mosaic could not lower the chunked stack+flatten construction on this
        # jaxlib; fall back to the unit-slice construction (same HBM layout).
        safe = _build_call(
            partial(_window_kernel_safe, length=length, stride=stride,
                    num_windows=num_windows),
            rows, n, flat, x2.dtype, tr, vmem_limit)
        out = jax.block_until_ready(safe(x2))

    out = out.reshape(lead + (length, num_windows))   # free bitcast reshape
    out = jnp.moveaxis(out, -2, d)                    # no-op for dim=-1
    return out


if __name__ == "__main__":
    key = jax.random.PRNGKey(0)
    B, C, N = 2, 4, 16
    length, stride = 8, 2
    x = jax.random.normal(key, (B, C, N), dtype=jnp.float32)

    out = jax.block_until_ready(window_forward(x, length, stride))

    # Pure-JAX reference of the module's forward pass.
    nw = (N - length) // stride + 1
    ref = jnp.stack(
        [x[..., w * stride: w * stride + length] for w in range(nw)], axis=-1)

    assert out.shape == (B, C, length, nw), out.shape
    assert jnp.allclose(out, ref), "Pallas output mismatch vs reference"
    print("KERNEL_OK")
</pallas_src>

<mosaic_0001>
module attributes {stable_mosaic.version = 11 : i64} {
  func.func @_window_kernel_fast(%arg0: i32, %arg1: memref<8x16xf32, #tpu.memory_space<vmem>>, %arg2: memref<8x40xf32, #tpu.memory_space<vmem>>) attributes {dimension_semantics = [#tpu.dimension_semantics<parallel>], iteration_bounds = array<i64: 1>, scalar_prefetch = 0 : i64, scratch_operands = 0 : i64, tpu.core_type = #tpu.core_type<tc>, window_params = [{transform_indices = @transform_0, window_bounds = array<i64: 8, 16>}, {transform_indices = @transform_1, window_bounds = array<i64: 8, 40>}]} {
    %c0 = arith.constant 0 : index
    %c0_0 = arith.constant 0 : index
    %0 = vector.load %arg1[%c0, %c0_0] : memref<8x16xf32, #tpu.memory_space<vmem>>, vector<8x8xf32>
    %c0_1 = arith.constant 0 : index
    %c2 = arith.constant 2 : index
    %1 = vector.load %arg1[%c0_1, %c2] : memref<8x16xf32, #tpu.memory_space<vmem>>, vector<8x8xf32>
    %c0_2 = arith.constant 0 : index
    %c4 = arith.constant 4 : index
    %2 = vector.load %arg1[%c0_2, %c4] : memref<8x16xf32, #tpu.memory_space<vmem>>, vector<8x8xf32>
    %c0_3 = arith.constant 0 : index
    %c6 = arith.constant 6 : index
    %3 = vector.load %arg1[%c0_3, %c6] : memref<8x16xf32, #tpu.memory_space<vmem>>, vector<8x8xf32>
    %c0_4 = arith.constant 0 : index
    %c8 = arith.constant 8 : index
    %4 = vector.load %arg1[%c0_4, %c8] : memref<8x16xf32, #tpu.memory_space<vmem>>, vector<8x8xf32>
    %5 = vector.shape_cast %0 : vector<8x8xf32> to vector<8x8x1xf32>
    %6 = vector.shape_cast %1 : vector<8x8xf32> to vector<8x8x1xf32>
    %7 = vector.shape_cast %2 : vector<8x8xf32> to vector<8x8x1xf32>
    %8 = vector.shape_cast %3 : vector<8x8xf32> to vector<8x8x1xf32>
    %9 = vector.shape_cast %4 : vector<8x8xf32> to vector<8x8x1xf32>
    %10 = tpu.concatenate %5, %6, %7, %8, %9 in 2 : vector<8x8x1xf32>, vector<8x8x1xf32>, vector<8x8x1xf32>, vector<8x8x1xf32>, vector<8x8x1xf32> -> vector<8x8x5xf32>
    %11 = vector.shape_cast %10 : vector<8x8x5xf32> to vector<8x40xf32>
    %c0_5 = arith.constant 0 : index
    %c0_6 = arith.constant 0 : index
    %12 = vector.load %arg2[%c0_5, %c0_6] : memref<8x40xf32, #tpu.memory_space<vmem>>, vector<8x40xf32>
    tpu.vector_store %arg2[%c0_5, %c0_6], %11 {strides = array<i32>} : memref<8x40xf32, #tpu.memory_space<vmem>>, vector<8x40xf32>,
    return
  }
  func.func @transform_0(%arg0: i32) -> (i32, i32) {
    %c0_i32 = arith.constant 0 : i32
    %c0_i32_0 = arith.constant 0 : i32
    return %arg0, %c0_i32 : i32, i32
  }
  func.func @transform_1(%arg0: i32) -> (i32, i32) {
    %c0_i32 = arith.constant 0 : i32
    %c0_i32_0 = arith.constant 0 : i32
    return %arg0, %c0_i32 : i32, i32
  }
}

module attributes {stable_mosaic.version = 11 : i64} {
  func.func @_window_kernel_safe(%arg0: i32, %arg1: memref<8x16xf32, #tpu.memory_space<vmem>>, %arg2: memref<8x40xf32, #tpu.memory_space<vmem>>) attributes {dimension_semantics = [#tpu.dimension_semantics<parallel>], iteration_bounds = array<i64: 1>, scalar_prefetch = 0 : i64, scratch_operands = 0 : i64, tpu.core_type = #tpu.core_type<tc>, window_params = [{transform_indices = @transform_0, window_bounds = array<i64: 8, 16>}, {transform_indices = @transform_1, window_bounds = array<i64: 8, 40>}]} {
    %c0 = arith.constant 0 : index
    %c0_0 = arith.constant 0 : index
    %0 = vector.load %arg1[%c0, %c0_0] : memref<8x16xf32, #tpu.memory_space<vmem>>, vector<8x1xf32>
    %c0_1 = arith.constant 0 : index
    %c2 = arith.constant 2 : index
    %1 = vector.load %arg1[%c0_1, %c2] : memref<8x16xf32, #tpu.memory_space<vmem>>, vector<8x1xf32>
    %c0_2 = arith.constant 0 : index
    %c4 = arith.constant 4 : index
    %2 = vector.load %arg1[%c0_2, %c4] : memref<8x16xf32, #tpu.memory_space<vmem>>, vector<8x1xf32>
    %c0_3 = arith.constant 0 : index
    %c6 = arith.constant 6 : index
    %3 = vector.load %arg1[%c0_3, %c6] : memref<8x16xf32, #tpu.memory_space<vmem>>, vector<8x1xf32>
    %c0_4 = arith.constant 0 : index
    %c8 = arith.constant 8 : index
    %4 = vector.load %arg1[%c0_4, %c8] : memref<8x16xf32, #tpu.memory_space<vmem>>, vector<8x1xf32>
    %5 = tpu.concatenate %0, %1, %2, %3, %4 in 1 : vector<8x1xf32>, vector<8x1xf32>, vector<8x1xf32>, vector<8x1xf32>, vector<8x1xf32> -> vector<8x5xf32>
    %c0_5 = arith.constant 0 : index
    %c0_6 = arith.constant 0 : index
    %6 = vector.load %arg2[%c0_5, %c0_6] : memref<8x40xf32, #tpu.memory_space<vmem>>, vector<8x5xf32>
    tpu.vector_store %arg2[%c0_5, %c0_6], %5 {strides = array<i32>} : memref<8x40xf32, #tpu.memory_space<vmem>>, vector<8x5xf32>,
    %c0_7 = arith.constant 0 : index
    %c1 = arith.constant 1 : index
    %7 = vector.load %arg1[%c0_7, %c1] : memref<8x16xf32, #tpu.memory_space<vmem>>, vector<8x1xf32>
    %c0_8 = arith.constant 0 : index
    %c3 = arith.constant 3 : index
    %8 = vector.load %arg1[%c0_8, %c3] : memref<8x16xf32, #tpu.memory_space<vmem>>, vector<8x1xf32>
    %c0_9 = arith.constant 0 : index
    %c5 = arith.constant 5 : index
    %9 = vector.load %arg1[%c0_9, %c5] : memref<8x16xf32, #tpu.memory_space<vmem>>, vector<8x1xf32>
    %c0_10 = arith.constant 0 : index
    %c7 = arith.constant 7 : index
    %10 = vector.load %arg1[%c0_10, %c7] : memref<8x16xf32, #tpu.memory_space<vmem>>, vector<8x1xf32>
    %c0_11 = arith.constant 0 : index
    %c9 = arith.constant 9 : index
    %11 = vector.load %arg1[%c0_11, %c9] : memref<8x16xf32, #tpu.memory_space<vmem>>, vector<8x1xf32>
    %12 = tpu.concatenate %7, %8, %9, %10, %11 in 1 : vector<8x1xf32>, vector<8x1xf32>, vector<8x1xf32>, vector<8x1xf32>, vector<8x1xf32> -> vector<8x5xf32>
    %c0_12 = arith.constant 0 : index
    %c5_13 = arith.constant 5 : index
    %13 = vector.load %arg2[%c0_12, %c5_13] : memref<8x40xf32, #tpu.memory_space<vmem>>, vector<8x5xf32>
    tpu.vector_store %arg2[%c0_12, %c5_13], %12 {strides = array<i32>} : memref<8x40xf32, #tpu.memory_space<vmem>>, vector<8x5xf32>,
    %c0_14 = arith.constant 0 : index
    %c2_15 = arith.constant 2 : index
    %14 = vector.load %arg1[%c0_14, %c2_15] : memref<8x16xf32, #tpu.memory_space<vmem>>, vector<8x1xf32>
    %c0_16 = arith.constant 0 : index
    %c4_17 = arith.constant 4 : index
    %15 = vector.load %arg1[%c0_16, %c4_17] : memref<8x16xf32, #tpu.memory_space<vmem>>, vector<8x1xf32>
    %c0_18 = arith.constant 0 : index
    %c6_19 = arith.constant 6 : index
    %16 = vector.load %arg1[%c0_18, %c6_19] : memref<8x16xf32, #tpu.memory_space<vmem>>, vector<8x1xf32>
    %c0_20 = arith.constant 0 : index
    %c8_21 = arith.constant 8 : index
    %17 = vector.load %arg1[%c0_20, %c8_21] : memref<8x16xf32, #tpu.memory_space<vmem>>, vector<8x1xf32>
    %c0_22 = arith.constant 0 : index
    %c10 = arith.constant 10 : index
    %18 = vector.load %arg1[%c0_22, %c10] : memref<8x16xf32, #tpu.memory_space<vmem>>, vector<8x1xf32>
    %19 = tpu.concatenate %14, %15, %16, %17, %18 in 1 : vector<8x1xf32>, vector<8x1xf32>, vector<8x1xf32>, vector<8x1xf32>, vector<8x1xf32> -> vector<8x5xf32>
    %c0_23 = arith.constant 0 : index
    %c10_24 = arith.constant 10 : index
    %20 = vector.load %arg2[%c0_23, %c10_24] : memref<8x40xf32, #tpu.memory_space<vmem>>, vector<8x5xf32>
    tpu.vector_store %arg2[%c0_23, %c10_24], %19 {strides = array<i32>} : memref<8x40xf32, #tpu.memory_space<vmem>>, vector<8x5xf32>,
    %c0_25 = arith.constant 0 : index
    %c3_26 = arith.constant 3 : index
    %21 = vector.load %arg1[%c0_25, %c3_26] : memref<8x16xf32, #tpu.memory_space<vmem>>, vector<8x1xf32>
    %c0_27 = arith.constant 0 : index
    %c5_28 = arith.constant 5 : index
    %22 = vector.load %arg1[%c0_27, %c5_28] : memref<8x16xf32, #tpu.memory_space<vmem>>, vector<8x1xf32>
    %c0_29 = arith.constant 0 : index
    %c7_30 = arith.constant 7 : index
    %23 = vector.load %arg1[%c0_29, %c7_30] : memref<8x16xf32, #tpu.memory_space<vmem>>, vector<8x1xf32>
    %c0_31 = arith.constant 0 : index
    %c9_32 = arith.constant 9 : index
    %24 = vector.load %arg1[%c0_31, %c9_32] : memref<8x16xf32, #tpu.memory_space<vmem>>, vector<8x1xf32>
    %c0_33 = arith.constant 0 : index
    %c11 = arith.constant 11 : index
    %25 = vector.load %arg1[%c0_33, %c11] : memref<8x16xf32, #tpu.memory_space<vmem>>, vector<8x1xf32>
    %26 = tpu.concatenate %21, %22, %23, %24, %25 in 1 : vector<8x1xf32>, vector<8x1xf32>, vector<8x1xf32>, vector<8x1xf32>, vector<8x1xf32> -> vector<8x5xf32>
    %c0_34 = arith.constant 0 : index
    %c15 = arith.constant 15 : index
    %27 = vector.load %arg2[%c0_34, %c15] : memref<8x40xf32, #tpu.memory_space<vmem>>, vector<8x5xf32>
    tpu.vector_store %arg2[%c0_34, %c15], %26 {strides = array<i32>} : memref<8x40xf32, #tpu.memory_space<vmem>>, vector<8x5xf32>,
    %c0_35 = arith.constant 0 : index
    %c4_36 = arith.constant 4 : index
    %28 = vector.load %arg1[%c0_35, %c4_36] : memref<8x16xf32, #tpu.memory_space<vmem>>, vector<8x1xf32>
    %c0_37 = arith.constant 0 : index
    %c6_38 = arith.constant 6 : index
    %29 = vector.load %arg1[%c0_37, %c6_38] : memref<8x16xf32, #tpu.memory_space<vmem>>, vector<8x1xf32>
    %c0_39 = arith.constant 0 : index
    %c8_40 = arith.constant 8 : index
    %30 = vector.load %arg1[%c0_39, %c8_40] : memref<8x16xf32, #tpu.memory_space<vmem>>, vector<8x1xf32>
    %c0_41 = arith.constant 0 : index
    %c10_42 = arith.constant 10 : index
    %31 = vector.load %arg1[%c0_41, %c10_42] : memref<8x16xf32, #tpu.memory_space<vmem>>, vector<8x1xf32>
    %c0_43 = arith.constant 0 : index
    %c12 = arith.constant 12 : index
    %32 = vector.load %arg1[%c0_43, %c12] : memref<8x16xf32, #tpu.memory_space<vmem>>, vector<8x1xf32>
    %33 = tpu.concatenate %28, %29, %30, %31, %32 in 1 : vector<8x1xf32>, vector<8x1xf32>, vector<8x1xf32>, vector<8x1xf32>, vector<8x1xf32> -> vector<8x5xf32>
    %c0_44 = arith.constant 0 : index
    %c20 = arith.constant 20 : index
    %34 = vector.load %arg2[%c0_44, %c20] : memref<8x40xf32, #tpu.memory_space<vmem>>, vector<8x5xf32>
    tpu.vector_store %arg2[%c0_44, %c20], %33 {strides = array<i32>} : memref<8x40xf32, #tpu.memory_space<vmem>>, vector<8x5xf32>,
    %c0_45 = arith.constant 0 : index
    %c5_46 = arith.constant 5 : index
    %35 = vector.load %arg1[%c0_45, %c5_46] : memref<8x16xf32, #tpu.memory_space<vmem>>, vector<8x1xf32>
    %c0_47 = arith.constant 0 : index
    %c7_48 = arith.constant 7 : index
    %36 = vector.load %arg1[%c0_47, %c7_48] : memref<8x16xf32, #tpu.memory_space<vmem>>, vector<8x1xf32>
    %c0_49 = arith.constant 0 : index
    %c9_50 = arith.constant 9 : index
    %37 = vector.load %arg1[%c0_49, %c9_50] : memref<8x16xf32, #tpu.memory_space<vmem>>, vector<8x1xf32>
    %c0_51 = arith.constant 0 : index
    %c11_52 = arith.constant 11 : index
    %38 = vector.load %arg1[%c0_51, %c11_52] : memref<8x16xf32, #tpu.memory_space<vmem>>, vector<8x1xf32>
    %c0_53 = arith.constant 0 : index
    %c13 = arith.constant 13 : index
    %39 = vector.load %arg1[%c0_53, %c13] : memref<8x16xf32, #tpu.memory_space<vmem>>, vector<8x1xf32>
    %40 = tpu.concatenate %35, %36, %37, %38, %39 in 1 : vector<8x1xf32>, vector<8x1xf32>, vector<8x1xf32>, vector<8x1xf32>, vector<8x1xf32> -> vector<8x5xf32>
    %c0_54 = arith.constant 0 : index
    %c25 = arith.constant 25 : index
    %41 = vector.load %arg2[%c0_54, %c25] : memref<8x40xf32, #tpu.memory_space<vmem>>, vector<8x5xf32>
    tpu.vector_store %arg2[%c0_54, %c25], %40 {strides = array<i32>} : memref<8x40xf32, #tpu.memory_space<vmem>>, vector<8x5xf32>,
    %c0_55 = arith.constant 0 : index
    %c6_56 = arith.constant 6 : index
    %42 = vector.load %arg1[%c0_55, %c6_56] : memref<8x16xf32, #tpu.memory_space<vmem>>, vector<8x1xf32>
    %c0_57 = arith.constant 0 : index
    %c8_58 = arith.constant 8 : index
    %43 = vector.load %arg1[%c0_57, %c8_58] : memref<8x16xf32, #tpu.memory_space<vmem>>, vector<8x1xf32>
    %c0_59 = arith.constant 0 : index
    %c10_60 = arith.constant 10 : index
    %44 = vector.load %arg1[%c0_59, %c10_60] : memref<8x16xf32, #tpu.memory_space<vmem>>, vector<8x1xf32>
    %c0_61 = arith.constant 0 : index
    %c12_62 = arith.constant 12 : index
    %45 = vector.load %arg1[%c0_61, %c12_62] : memref<8x16xf32, #tpu.memory_space<vmem>>, vector<8x1xf32>
    %c0_63 = arith.constant 0 : index
    %c14 = arith.constant 14 : index
    %46 = vector.load %arg1[%c0_63, %c14] : memref<8x16xf32, #tpu.memory_space<vmem>>, vector<8x1xf32>
    %47 = tpu.concatenate %42, %43, %44, %45, %46 in 1 : vector<8x1xf32>, vector<8x1xf32>, vector<8x1xf32>, vector<8x1xf32>, vector<8x1xf32> -> vector<8x5xf32>
    %c0_64 = arith.constant 0 : index
    %c30 = arith.constant 30 : index
    %48 = vector.load %arg2[%c0_64, %c30] : memref<8x40xf32, #tpu.memory_space<vmem>>, vector<8x5xf32>
    tpu.vector_store %arg2[%c0_64, %c30], %47 {strides = array<i32>} : memref<8x40xf32, #tpu.memory_space<vmem>>, vector<8x5xf32>,
    %c0_65 = arith.constant 0 : index
    %c7_66 = arith.constant 7 : index
    %49 = vector.load %arg1[%c0_65, %c7_66] : memref<8x16xf32, #tpu.memory_space<vmem>>, vector<8x1xf32>
    %c0_67 = arith.constant 0 : index
    %c9_68 = arith.constant 9 : index
    %50 = vector.load %arg1[%c0_67, %c9_68] : memref<8x16xf32, #tpu.memory_space<vmem>>, vector<8x1xf32>
    %c0_69 = arith.constant 0 : index
    %c11_70 = arith.constant 11 : index
    %51 = vector.load %arg1[%c0_69, %c11_70] : memref<8x16xf32, #tpu.memory_space<vmem>>, vector<8x1xf32>
    %c0_71 = arith.constant 0 : index
    %c13_72 = arith.constant 13 : index
    %52 = vector.load %arg1[%c0_71, %c13_72] : memref<8x16xf32, #tpu.memory_space<vmem>>, vector<8x1xf32>
    %c0_73 = arith.constant 0 : index
    %c15_74 = arith.constant 15 : index
    %53 = vector.load %arg1[%c0_73, %c15_74] : memref<8x16xf32, #tpu.memory_space<vmem>>, vector<8x1xf32>
    %54 = tpu.concatenate %49, %50, %51, %52, %53 in 1 : vector<8x1xf32>, vector<8x1xf32>, vector<8x1xf32>, vector<8x1xf32>, vector<8x1xf32> -> vector<8x5xf32>
    %c0_75 = arith.constant 0 : index
    %c35 = arith.constant 35 : index
    %55 = vector.load %arg2[%c0_75, %c35] : memref<8x40xf32, #tpu.memory_space<vmem>>, vector<8x5xf32>
    tpu.vector_store %arg2[%c0_75, %c35], %54 {strides = array<i32>} : memref<8x40xf32, #tpu.memory_space<vmem>>, vector<8x5xf32>,
    return
  }
  func.func @transform_0(%arg0: i32) -> (i32, i32) {
    %c0_i32 = arith.constant 0 : i32
    %c0_i32_0 = arith.constant 0 : i32
    return %arg0, %c0_i32 : i32, i32
  }
  func.func @transform_1(%arg0: i32) -> (i32, i32) {
    %c0_i32 = arith.constant 0 : i32
    %c0_i32_0 = arith.constant 0 : i32
    return %arg0, %c0_i32 : i32, i32
  }
}

</mosaic_0001>

<llo_original>
// kernel: tpu_custom_call.1
$region0: #{tpu_custom_call.1}
  #allocation0 [shape = 'u32[]', space=smem, size = 0x4, offset = 0x4, fixed_abs, tag = 'smem constant byte address 0x4 - core index']
  #allocation1 [shape = 'u32[144,128]{1,0:T(1,128)}', space=vmem, size = 0x12000, scoped, tag = 'internal scratch']
  %s0 = inlined_call_operand.hbm [shape: f32[8,16], index: 0, kind: input, shape index: {}]
  %s1 = inlined_call_operand.hbm [shape: f32[8,40], index: 1, kind: output, shape index: {}]
  %s2 = sld [smem:[#allocation0]]
  $region18: #{tpu_custom_call.1} parent=0
    _
  %s4 = ssub.s32 1, %s2
  %s5 = scalar_select 0, %s4, %s2
  $region1: #{tpu_custom_call.1} parent=0
    #allocation2 [shape = 'u8[4096]{0}', space=vmem, size = 0x1000, scoped, tag = 'input window, operand 0, single buffered']
    #allocation3 [shape = 's32[1]{0}', space=sflag, size = 0x4, scoped, tag = 'scoped memory for tpu_custom_call.1']
    #allocation4 [shape = 's32[1]{0}', space=sflag, size = 0x4, scoped, tag = 'scoped memory for tpu_custom_call.1']
    #allocation5 [shape = 'u8[4096]{0}', space=vmem, size = 0x1000, scoped, tag = 'output window, operand 0, single buffered']
    %6 = vsyncpa [#allocation3], 0
    %7 = vsyncpa [#allocation4], 0
    // Predicated region
    $region2: #{tpu_custom_call.1} parent=1 // pred_check
      _
    $region3: #{tpu_custom_call.1} parent=1 // pred_check_branch
      %9 = sbr.rel (0) target = $region5
    $region4: #{tpu_custom_call.1} parent=1 // pred_region
      %s11 = ssub.s32 128, 128
      %12 = vsyncadd [#allocation3], %s11
      %s14 = sshll.u32 [#allocation2], 4
      %s15 = int_to_ptr.vmem [resolvable:$true] %s14
      %17 = dma.hbm_to_vmem [thread:$0]  %s0, 128, %s15, [#allocation3]
    $region5: #{tpu_custom_call.1} parent=1 // pred_fallthru
      _
    // Predicated region
    $region6: #{tpu_custom_call.1} parent=1 // pred_check
      _
    $region7: #{tpu_custom_call.1} parent=1 // pred_check_branch
      %19 = sbr.rel (0) target = $region9
    $region8: #{tpu_custom_call.1} parent=1 // pred_region
      %20 = dma.done [#allocation3], 128
    $region9: #{tpu_custom_call.1} parent=1 // pred_fallthru
      _
    %v21 = vld [vmem:[#allocation2] sm:$0xff]
    %v22 = vlaneseq
    %v23 = vshrl.u32 %v22, 7
    %v24 = vsub.s32 0, %v23
    %v25 = vrot.slane %v21, %v24
    %27 = vbcast.lane.b32.xlu0 %v25, 256
    %v28 = vpop.permute.xlu0 %27
    %v29 = vlaneseq
    %v30 = vshrl.u32 %v29, 7
    %v31 = vsub.s32 1, %v30
    %v32 = vrot.slane %v21, %v31
    %34 = vbcast.lane.b32.xlu0 %v32, 256
    %v35 = vpop.permute.xlu0 %34
    %v36 = vlaneseq
    %v37 = vshrl.u32 %v36, 7
    %v38 = vsub.s32 2, %v37
    %v39 = vrot.slane %v21, %v38
    %41 = vbcast.lane.b32.xlu0 %v39, 256
    %v42 = vpop.permute.xlu0 %41
    %v43 = vlaneseq
    %v44 = vshrl.u32 %v43, 7
    %v45 = vsub.s32 3, %v44
    %v46 = vrot.slane %v21, %v45
    %48 = vbcast.lane.b32.xlu0 %v46, 256
    %v49 = vpop.permute.xlu0 %48
    %v50 = vlaneseq
    %v51 = vshrl.u32 %v50, 7
    %v52 = vsub.s32 4, %v51
    %v53 = vrot.slane %v21, %v52
    %55 = vbcast.lane.b32.xlu0 %v53, 256
    %v56 = vpop.permute.xlu0 %55
    %v57 = vlaneseq
    %v58 = vshrl.u32 %v57, 7
    %v59 = vsub.s32 5, %v58
    %v60 = vrot.slane %v21, %v59
    %62 = vbcast.lane.b32.xlu0 %v60, 256
    %v63 = vpop.permute.xlu0 %62
    %v64 = vlaneseq
    %v65 = vshrl.u32 %v64, 7
    %v66 = vsub.s32 6, %v65
    %v67 = vrot.slane %v21, %v66
    %69 = vbcast.lane.b32.xlu0 %v67, 256
    %v70 = vpop.permute.xlu0 %69
    %v71 = vlaneseq
    %v72 = vshrl.u32 %v71, 7
    %v73 = vsub.s32 7, %v72
    %v74 = vrot.slane %v21, %v73
    %76 = vbcast.lane.b32.xlu0 %v74, 256
    %v77 = vpop.permute.xlu0 %76
    %s79 = sor.u32 256, 2
    %80 = vbcast.lane.b32.xlu0 %v25, %s79
    %v81 = vpop.permute.xlu0 %80
    %s83 = sor.u32 256, 2
    %84 = vbcast.lane.b32.xlu0 %v32, %s83
    %v85 = vpop.permute.xlu0 %84
    %s87 = sor.u32 256, 2
    %88 = vbcast.lane.b32.xlu0 %v39, %s87
    %v89 = vpop.permute.xlu0 %88
    %s91 = sor.u32 256, 2
    %92 = vbcast.lane.b32.xlu0 %v46, %s91
    %v93 = vpop.permute.xlu0 %92
    %s95 = sor.u32 256, 2
    %96 = vbcast.lane.b32.xlu0 %v53, %s95
    %v97 = vpop.permute.xlu0 %96
    %s99 = sor.u32 256, 2
    %100 = vbcast.lane.b32.xlu0 %v60, %s99
    %v101 = vpop.permute.xlu0 %100
    %s103 = sor.u32 256, 2
    %104 = vbcast.lane.b32.xlu0 %v67, %s103
    %v105 = vpop.permute.xlu0 %104
    %s107 = sor.u32 256, 2
    %108 = vbcast.lane.b32.xlu0 %v74, %s107
    %v109 = vpop.permute.xlu0 %108
    %s111 = sor.u32 256, 4
    %112 = vbcast.lane.b32.xlu0 %v25, %s111
    %v113 = vpop.permute.xlu0 %112
    %s115 = sor.u32 256, 4
    %116 = vbcast.lane.b32.xlu0 %v32, %s115
    %v117 = vpop.permute.xlu0 %116
    %s119 = sor.u32 256, 4
    %120 = vbcast.lane.b32.xlu0 %v39, %s119
    %v121 = vpop.permute.xlu0 %120
    %s123 = sor.u32 256, 4
    %124 = vbcast.lane.b32.xlu0 %v46, %s123
    %v125 = vpop.permute.xlu0 %124
    %s127 = sor.u32 256, 4
    %128 = vbcast.lane.b32.xlu0 %v53, %s127
    %v129 = vpop.permute.xlu0 %128
    %s131 = sor.u32 256, 4
    %132 = vbcast.lane.b32.xlu0 %v60, %s131
    %v133 = vpop.permute.xlu0 %132
    %s135 = sor.u32 256, 4
    %136 = vbcast.lane.b32.xlu0 %v67, %s135
    %v137 = vpop.permute.xlu0 %136
    %s139 = sor.u32 256, 4
    %140 = vbcast.lane.b32.xlu0 %v74, %s139
    %v141 = vpop.permute.xlu0 %140
    %s143 = sor.u32 256, 6
    %144 = vbcast.lane.b32.xlu0 %v25, %s143
    %v145 = vpop.permute.xlu0 %144
    %s147 = sor.u32 256, 6
    %148 = vbcast.lane.b32.xlu0 %v32, %s147
    %v149 = vpop.permute.xlu0 %148
    %s151 = sor.u32 256, 6
    %152 = vbcast.lane.b32.xlu0 %v39, %s151
    %v153 = vpop.permute.xlu0 %152
    %s155 = sor.u32 256, 6
    %156 = vbcast.lane.b32.xlu0 %v46, %s155
    %v157 = vpop.permute.xlu0 %156
    %s159 = sor.u32 256, 6
    %160 = vbcast.lane.b32.xlu0 %v53, %s159
    %v161 = vpop.permute.xlu0 %160
    %s163 = sor.u32 256, 6
    %164 = vbcast.lane.b32.xlu0 %v60, %s163
    %v165 = vpop.permute.xlu0 %164
    %s167 = sor.u32 256, 6
    %168 = vbcast.lane.b32.xlu0 %v67, %s167
    %v169 = vpop.permute.xlu0 %168
    %s171 = sor.u32 256, 6
    %172 = vbcast.lane.b32.xlu0 %v74, %s171
    %v173 = vpop.permute.xlu0 %172
    %s175 = sor.u32 256, 8
    %176 = vbcast.lane.b32.xlu0 %v25, %s175
    %v177 = vpop.permute.xlu0 %176
    %s179 = sor.u32 256, 8
    %180 = vbcast.lane.b32.xlu0 %v32, %s179
    %v181 = vpop.permute.xlu0 %180
    %s183 = sor.u32 256, 8
    %184 = vbcast.lane.b32.xlu0 %v39, %s183
    %v185 = vpop.permute.xlu0 %184
    %s187 = sor.u32 256, 8
    %188 = vbcast.lane.b32.xlu0 %v46, %s187
    %v189 = vpop.permute.xlu0 %188
    %s191 = sor.u32 256, 8
    %192 = vbcast.lane.b32.xlu0 %v53, %s191
    %v193 = vpop.permute.xlu0 %192
    %s195 = sor.u32 256, 8
    %196 = vbcast.lane.b32.xlu0 %v60, %s195
    %v197 = vpop.permute.xlu0 %196
    %s199 = sor.u32 256, 8
    %200 = vbcast.lane.b32.xlu0 %v67, %s199
    %v201 = vpop.permute.xlu0 %200
    %s203 = sor.u32 256, 8
    %204 = vbcast.lane.b32.xlu0 %v74, %s203
    %v205 = vpop.permute.xlu0 %204
    %vm206 = vcmask 7168
    %v207 = vsel %vm206, %v28, %v81
    %v208 = vsel %vm206, %v35, %v85
    %v209 = vsel %vm206, %v42, %v89
    %v210 = vsel %vm206, %v49, %v93
    %v211 = vsel %vm206, %v56, %v97
    %v212 = vsel %vm206, %v63, %v101
    %v213 = vsel %vm206, %v70, %v105
    %v214 = vsel %vm206, %v77, %v109
    %vm215 = vcmask 15360
    %v216 = vsel %vm215, %v207, %v113
    %v217 = vsel %vm215, %v208, %v117
    %v218 = vsel %vm215, %v209, %v121
    %v219 = vsel %vm215, %v210, %v125
    %v220 = vsel %vm215, %v211, %v129
    %v221 = vsel %vm215, %v212, %v133
    %v222 = vsel %vm215, %v213, %v137
    %v223 = vsel %vm215, %v214, %v141
    %vm224 = vcmask 23552
    %v225 = vsel %vm224, %v216, %v145
    %v226 = vsel %vm224, %v217, %v149
    %v227 = vsel %vm224, %v218, %v153
    %v228 = vsel %vm224, %v219, %v157
    %v229 = vsel %vm224, %v220, %v161
    %v230 = vsel %vm224, %v221, %v165
    %v231 = vsel %vm224, %v222, %v169
    %v232 = vsel %vm224, %v223, %v173
    %vm233 = vcmask 31744
    %v234 = vsel %vm233, %v225, %v177
    %v235 = vsel %vm233, %v226, %v181
    %v236 = vsel %vm233, %v227, %v185
    %v237 = vsel %vm233, %v228, %v189
    %v238 = vsel %vm233, %v229, %v193
    %v239 = vsel %vm233, %v230, %v197
    %v240 = vsel %vm233, %v231, %v201
    %v241 = vsel %vm233, %v232, %v205
    %v242 = vcombine.low %v234, %v236
    %v243 = vcombine.high %v234, %v236
    %v245 = vunpack.c.l.s4 1983009808
    %v246 = vunpack.c.0.s8 %v245
    %v247 = vlaneseq
    %v248 = vshrl.u32 %v247, 7
    %v249 = vsub.s32 %v246, %v248
    %v250 = vrot.slane %v242, %v249
    %v252 = vunpack.c.l.s4 1983009808
    %v253 = vunpack.c.0.s8 %v252
    %v254 = vlaneseq
    %v255 = vshrl.u32 %v254, 7
    %v256 = vsub.s32 %v253, %v255
    %v257 = vrot.slane %v243, %v256
    %v258 = vcombine.low %v235, %v237
    %v259 = vcombine.high %v235, %v237
    %v261 = vunpack.c.l.s4 1983009808
    %v262 = vunpack.c.0.s8 %v261
    %v263 = vlaneseq
    %v264 = vshrl.u32 %v263, 7
    %v265 = vsub.s32 %v262, %v264
    %v266 = vrot.slane %v258, %v265
    %v268 = vunpack.c.l.s4 1983009808
    %v269 = vunpack.c.0.s8 %v268
    %v270 = vlaneseq
    %v271 = vshrl.u32 %v270, 7
    %v272 = vsub.s32 %v269, %v271
    %v273 = vrot.slane %v259, %v272
    %v274 = vcombine.low %v238, %v240
    %v275 = vcombine.high %v238, %v240
    %v277 = vunpack.c.l.s4 1983009808
    %v278 = vunpack.c.0.s8 %v277
    %v279 = vlaneseq
    %v280 = vshrl.u32 %v279, 7
    %v281 = vsub.s32 %v278, %v280
    %v282 = vrot.slane %v274, %v281
    %v284 = vunpack.c.l.s4 1983009808
    %v285 = vunpack.c.0.s8 %v284
    %v286 = vlaneseq
    %v287 = vshrl.u32 %v286, 7
    %v288 = vsub.s32 %v285, %v287
    %v289 = vrot.slane %v275, %v288
    %v290 = vcombine.low %v239, %v241
    %v291 = vcombine.high %v239, %v241
    %v293 = vunpack.c.l.s4 1983009808
    %v294 = vunpack.c.0.s8 %v293
    %v295 = vlaneseq
    %v296 = vshrl.u32 %v295, 7
    %v297 = vsub.s32 %v294, %v296
    %v298 = vrot.slane %v290, %v297
    %v300 = vunpack.c.l.s4 1983009808
    %v301 = vunpack.c.0.s8 %v300
    %v302 = vlaneseq
    %v303 = vshrl.u32 %v302, 7
    %v304 = vsub.s32 %v301, %v303
    %v305 = vrot.slane %v291, %v304
    %v306 = vcombine.low %v250, %v266
    %v307 = vcombine.high %v250, %v266
    %v309 = vunpack.c.l.s4 1934713408
    %v310 = vunpack.c.0.s8 %v309
    %v311 = vlaneseq
    %v312 = vshrl.u32 %v311, 7
    %v313 = vsub.s32 %v310, %v312
    %v314 = vrot.slane %v306, %v313
    %v316 = vunpack.c.l.s4 1934713408
    %v317 = vunpack.c.0.s8 %v316
    %v318 = vlaneseq
    %v319 = vshrl.u32 %v318, 7
    %v320 = vsub.s32 %v317, %v319
    %v321 = vrot.slane %v307, %v320
    %v322 = vcombine.low %v257, %v273
    %v323 = vcombine.high %v257, %v273
    %v325 = vunpack.c.l.s4 1934713408
    %v326 = vunpack.c.0.s8 %v325
    %v327 = vlaneseq
    %v328 = vshrl.u32 %v327, 7
    %v329 = vsub.s32 %v326, %v328
    %v330 = vrot.slane %v322, %v329
    %v332 = vunpack.c.l.s4 1934713408
    %v333 = vunpack.c.0.s8 %v332
    %v334 = vlaneseq
    %v335 = vshrl.u32 %v334, 7
    %v336 = vsub.s32 %v333, %v335
    %v337 = vrot.slane %v323, %v336
    %v338 = vcombine.low %v282, %v298
    %v339 = vcombine.high %v282, %v298
    %v341 = vunpack.c.l.s4 1934713408
    %v342 = vunpack.c.0.s8 %v341
    %v343 = vlaneseq
    %v344 = vshrl.u32 %v343, 7
    %v345 = vsub.s32 %v342, %v344
    %v346 = vrot.slane %v338, %v345
    %v348 = vunpack.c.l.s4 1934713408
    %v349 = vunpack.c.0.s8 %v348
    %v350 = vlaneseq
    %v351 = vshrl.u32 %v350, 7
    %v352 = vsub.s32 %v349, %v351
    %v353 = vrot.slane %v339, %v352
    %v354 = vcombine.low %v289, %v305
    %v355 = vcombine.high %v289, %v305
    %v357 = vunpack.c.l.s4 1934713408
    %v358 = vunpack.c.0.s8 %v357
    %v359 = vlaneseq
    %v360 = vshrl.u32 %v359, 7
    %v361 = vsub.s32 %v358, %v360
    %v362 = vrot.slane %v354, %v361
    %v364 = vunpack.c.l.s4 1934713408
    %v365 = vunpack.c.0.s8 %v364
    %v366 = vlaneseq
    %v367 = vshrl.u32 %v366, 7
    %v368 = vsub.s32 %v365, %v367
    %v369 = vrot.slane %v355, %v368
    %v370 = vcombine.low %v314, %v346
    %v371 = vcombine.high %v314, %v346
    %v372 = vcombine.low %v321, %v353
    %v373 = vcombine.high %v321, %v353
    %v374 = vcombine.low %v330, %v362
    %v375 = vcombine.high %v330, %v362
    %v376 = vcombine.low %v337, %v369
    %v377 = vcombine.high %v337, %v369
    %379 = vrot.lane.b32.xlu0 %v371, 5
    %v380 = vpop.permute.xlu0 %379
    %383 = vrot.lane.b32.xlu0 %v372, 10
    %v384 = vpop.permute.xlu0 %383
    %387 = vrot.lane.b32.xlu0 %v373, 15
    %v388 = vpop.permute.xlu0 %387
    %391 = vrot.lane.b32.xlu0 %v374, 20
    %v392 = vpop.permute.xlu0 %391
    %395 = vrot.lane.b32.xlu0 %v375, 25
    %v396 = vpop.permute.xlu0 %395
    %399 = vrot.lane.b32.xlu0 %v376, 30
    %v400 = vpop.permute.xlu0 %399
    %403 = vrot.lane.b32.xlu0 %v377, 35
    %v404 = vpop.permute.xlu0 %403
    %vm406 = vcmask 39936
    %v407 = vsel %vm406, %v370, %v380
    %vm408 = vcmask 80896
    %v409 = vsel %vm408, %v407, %v384
    %vm410 = vcmask 121856
    %v411 = vsel %vm410, %v409, %v388
    %vm412 = vcmask 162816
    %v413 = vsel %vm412, %v411, %v392
    %vm414 = vcmask 203776
    %v415 = vsel %vm414, %v413, %v396
    %vm416 = vcmask 244736
    %v417 = vsel %vm416, %v415, %v400
    %vm418 = vcmask 285696
    %v419 = vsel %vm418, %v417, %v404
    %vm420 = vcmask 326656
    %421 = vst.msk [vmem:[#allocation5] sm:$0xff] %vm420, %v419
    // Predicated region
    $region10: #{tpu_custom_call.1} parent=1 // pred_check
      _
    $region11: #{tpu_custom_call.1} parent=1 // pred_check_branch
      %423 = sbr.rel (0) target = $region13
    $region12: #{tpu_custom_call.1} parent=1 // pred_region
      %s425 = ssub.s32 128, 128
      %426 = vsyncadd [#allocation4], %s425
      %s428 = sshll.u32 [#allocation5], 4
      %s429 = int_to_ptr.vmem [resolvable:$true] %s428
      %431 = dma.vmem_to_hbm [thread:$0]  %s429, 128, %s1, [#allocation4]
    $region13: #{tpu_custom_call.1} parent=1 // pred_fallthru
      _
    // Predicated region
    $region14: #{tpu_custom_call.1} parent=1 // pred_check
      _
    $region15: #{tpu_custom_call.1} parent=1 // pred_check_branch
      %433 = sbr.rel (0) target = $region17
    $region16: #{tpu_custom_call.1} parent=1 // pred_region
      %434 = dma.done [#allocation4], 128
    $region17: #{tpu_custom_call.1} parent=1 // pred_fallthru
      _
    %435 = vsyncpa [#allocation3], 1
    %436 = vsyncpa [#allocation4], 1

// kernel: tpu_custom_call.1
$region0: #{tpu_custom_call.1}
  #allocation0 [shape = 'u32[]', space=smem, size = 0x4, offset = 0x4, fixed_abs, tag = 'smem constant byte address 0x4 - core index']
  #allocation1 [shape = 'u32[144,128]{1,0:T(1,128)}', space=vmem, size = 0x12000, scoped, tag = 'internal scratch']
  %s0 = inlined_call_operand.hbm [shape: f32[8,16], index: 0, kind: input, shape index: {}]
  %s1 = inlined_call_operand.hbm [shape: f32[8,40], index: 1, kind: output, shape index: {}]
  %s2 = sld [smem:[#allocation0]]
  $region18: #{tpu_custom_call.1} parent=0
    _
  %s4 = ssub.s32 1, %s2
  %s5 = scalar_select 0, %s4, %s2
  $region1: #{tpu_custom_call.1} parent=0
    #allocation2 [shape = 'u8[4096]{0}', space=vmem, size = 0x1000, scoped, tag = 'input window, operand 0, single buffered']
    #allocation3 [shape = 's32[1]{0}', space=sflag, size = 0x4, scoped, tag = 'scoped memory for tpu_custom_call.1']
    #allocation4 [shape = 's32[1]{0}', space=sflag, size = 0x4, scoped, tag = 'scoped memory for tpu_custom_call.1']
    #allocation5 [shape = 'u8[4096]{0}', space=vmem, size = 0x1000, scoped, tag = 'output window, operand 0, single buffered']
    %6 = vsyncpa [#allocation3], 0
    %7 = vsyncpa [#allocation4], 0
    // Predicated region
    $region2: #{tpu_custom_call.1} parent=1 // pred_check
      _
    $region3: #{tpu_custom_call.1} parent=1 // pred_check_branch
      %9 = sbr.rel (0) target = $region5
    $region4: #{tpu_custom_call.1} parent=1 // pred_region
      %s11 = ssub.s32 128, 128
      %12 = vsyncadd [#allocation3], %s11
      %s14 = sshll.u32 [#allocation2], 4
      %s15 = int_to_ptr.vmem [resolvable:$true] %s14
      %17 = dma.hbm_to_vmem [thread:$0]  %s0, 128, %s15, [#allocation3]
    $region5: #{tpu_custom_call.1} parent=1 // pred_fallthru
      _
    // Predicated region
    $region6: #{tpu_custom_call.1} parent=1 // pred_check
      _
    $region7: #{tpu_custom_call.1} parent=1 // pred_check_branch
      %19 = sbr.rel (0) target = $region9
    $region8: #{tpu_custom_call.1} parent=1 // pred_region
      %20 = dma.done [#allocation3], 128
    $region9: #{tpu_custom_call.1} parent=1 // pred_fallthru
      _
    %v21 = vld [vmem:[#allocation2] sm:$0xff]
    %23 = vrot.lane.b32.xlu0 %v21, 127
    %v24 = vpop.permute.xlu0 %23
    %26 = vrot.lane.b32.xlu0 %v21, 126
    %v27 = vpop.permute.xlu0 %26
    %29 = vrot.lane.b32.xlu0 %v21, 125
    %v30 = vpop.permute.xlu0 %29
    %32 = vrot.lane.b32.xlu0 %v21, 124
    %v33 = vpop.permute.xlu0 %32
    %vm35 = vcmask 7168
    %v36 = vsel %vm35, %v21, %v24
    %vm37 = vcmask 15360
    %v38 = vsel %vm37, %v36, %v27
    %vm39 = vcmask 23552
    %v40 = vsel %vm39, %v38, %v30
    %vm41 = vcmask 31744
    %v42 = vsel %vm41, %v40, %v33
    %vm43 = vcmask 39936
    %44 = vst.msk [vmem:[#allocation5] sm:$0xff] %vm43, %v42
    %v45 = vld [vmem:[#allocation2] sm:$0xff]
    %47 = vrot.lane.b32.xlu0 %v45, 127
    %v48 = vpop.permute.xlu0 %47
    %50 = vrot.lane.b32.xlu0 %v45, 126
    %v51 = vpop.permute.xlu0 %50
    %53 = vrot.lane.b32.xlu0 %v45, 125
    %v54 = vpop.permute.xlu0 %53
    %56 = vrot.lane.b32.xlu0 %v45, 124
    %v57 = vpop.permute.xlu0 %56
    %59 = vrot.lane.b32.xlu0 %v45, 123
    %v60 = vpop.permute.xlu0 %59
    %v62 = vsel %vm35, %v48, %v51
    %v63 = vsel %vm37, %v62, %v54
    %v64 = vsel %vm39, %v63, %v57
    %v65 = vsel %vm41, %v64, %v60
    %67 = vrot.lane.b32.xlu0 %v65, 5
    %v68 = vpop.permute.xlu0 %67
    %vm70 = vcmask 80936
    %71 = vst.msk [vmem:[#allocation5] sm:$0xff] %vm70, %v68
    %v72 = vld [vmem:[#allocation2] sm:$0xff]
    %74 = vrot.lane.b32.xlu0 %v72, 126
    %v75 = vpop.permute.xlu0 %74
    %77 = vrot.lane.b32.xlu0 %v72, 125
    %v78 = vpop.permute.xlu0 %77
    %80 = vrot.lane.b32.xlu0 %v72, 124
    %v81 = vpop.permute.xlu0 %80
    %83 = vrot.lane.b32.xlu0 %v72, 123
    %v84 = vpop.permute.xlu0 %83
    %86 = vrot.lane.b32.xlu0 %v72, 122
    %v87 = vpop.permute.xlu0 %86
    %v89 = vsel %vm35, %v75, %v78
    %v90 = vsel %vm37, %v89, %v81
    %v91 = vsel %vm39, %v90, %v84
    %v92 = vsel %vm41, %v91, %v87
    %94 = vrot.lane.b32.xlu0 %v92, 10
    %v95 = vpop.permute.xlu0 %94
    %vm97 = vcmask 121936
    %98 = vst.msk [vmem:[#allocation5] sm:$0xff] %vm97, %v95
    %v99 = vld [vmem:[#allocation2] sm:$0xff]
    %101 = vrot.lane.b32.xlu0 %v99, 125
    %v102 = vpop.permute.xlu0 %101
    %104 = vrot.lane.b32.xlu0 %v99, 124
    %v105 = vpop.permute.xlu0 %104
    %107 = vrot.lane.b32.xlu0 %v99, 123
    %v108 = vpop.permute.xlu0 %107
    %110 = vrot.lane.b32.xlu0 %v99, 122
    %v111 = vpop.permute.xlu0 %110
    %113 = vrot.lane.b32.xlu0 %v99, 121
    %v114 = vpop.permute.xlu0 %113
    %v116 = vsel %vm35, %v102, %v105
    %v117 = vsel %vm37, %v116, %v108
    %v118 = vsel %vm39, %v117, %v111
    %v119 = vsel %vm41, %v118, %v114
    %121 = vrot.lane.b32.xlu0 %v119, 15
    %v122 = vpop.permute.xlu0 %121
    %vm124 = vcmask 162936
    %125 = vst.msk [vmem:[#allocation5] sm:$0xff] %vm124, %v122
    %v126 = vld [vmem:[#allocation2] sm:$0xff]
    %128 = vrot.lane.b32.xlu0 %v126, 124
    %v129 = vpop.permute.xlu0 %128
    %131 = vrot.lane.b32.xlu0 %v126, 123
    %v132 = vpop.permute.xlu0 %131
    %134 = vrot.lane.b32.xlu0 %v126, 122
    %v135 = vpop.permute.xlu0 %134
    %137 = vrot.lane.b32.xlu0 %v126, 121
    %v138 = vpop.permute.xlu0 %137
    %140 = vrot.lane.b32.xlu0 %v126, 120
    %v141 = vpop.permute.xlu0 %140
    %v143 = vsel %vm35, %v129, %v132
    %v144 = vsel %vm37, %v143, %v135
    %v145 = vsel %vm39, %v144, %v138
    %v146 = vsel %vm41, %v145, %v141
    %148 = vrot.lane.b32.xlu0 %v146, 20
    %v149 = vpop.permute.xlu0 %148
    %vm151 = vcmask 203936
    %152 = vst.msk [vmem:[#allocation5] sm:$0xff] %vm151, %v149
    %v153 = vld [vmem:[#allocation2] sm:$0xff]
    %155 = vrot.lane.b32.xlu0 %v153, 123
    %v156 = vpop.permute.xlu0 %155
    %158 = vrot.lane.b32.xlu0 %v153, 122
    %v159 = vpop.permute.xlu0 %158
    %161 = vrot.lane.b32.xlu0 %v153, 121
    %v162 = vpop.permute.xlu0 %161
    %164 = vrot.lane.b32.xlu0 %v153, 120
    %v165 = vpop.permute.xlu0 %164
    %167 = vrot.lane.b32.xlu0 %v153, 119
    %v168 = vpop.permute.xlu0 %167
    %v170 = vsel %vm35, %v156, %v159
    %v171 = vsel %vm37, %v170, %v162
    %v172 = vsel %vm39, %v171, %v165
    %v173 = vsel %vm41, %v172, %v168
    %175 = vrot.lane.b32.xlu0 %v173, 25
    %v176 = vpop.permute.xlu0 %175
    %vm178 = vcmask 244936
    %179 = vst.msk [vmem:[#allocation5] sm:$0xff] %vm178, %v176
    %v180 = vld [vmem:[#allocation2] sm:$0xff]
    %182 = vrot.lane.b32.xlu0 %v180, 122
    %v183 = vpop.permute.xlu0 %182
    %185 = vrot.lane.b32.xlu0 %v180, 121
    %v186 = vpop.permute.xlu0 %185
    %188 = vrot.lane.b32.xlu0 %v180, 120
    %v189 = vpop.permute.xlu0 %188
    %191 = vrot.lane.b32.xlu0 %v180, 119
    %v192 = vpop.permute.xlu0 %191
    %194 = vrot.lane.b32.xlu0 %v180, 118
    %v195 = vpop.permute.xlu0 %194
    %v197 = vsel %vm35, %v183, %v186
    %v198 = vsel %vm37, %v197, %v189
    %v199 = vsel %vm39, %v198, %v192
    %v200 = vsel %vm41, %v199, %v195
    %202 = vrot.lane.b32.xlu0 %v200, 30
    %v203 = vpop.permute.xlu0 %202
    %vm205 = vcmask 285936
    %206 = vst.msk [vmem:[#allocation5] sm:$0xff] %vm205, %v203
    %v207 = vld [vmem:[#allocation2] sm:$0xff]
    %209 = vrot.lane.b32.xlu0 %v207, 121
    %v210 = vpop.permute.xlu0 %209
    %212 = vrot.lane.b32.xlu0 %v207, 120
    %v213 = vpop.permute.xlu0 %212
    %215 = vrot.lane.b32.xlu0 %v207, 119
    %v216 = vpop.permute.xlu0 %215
    %218 = vrot.lane.b32.xlu0 %v207, 118
    %v219 = vpop.permute.xlu0 %218
    %221 = vrot.lane.b32.xlu0 %v207, 117
    %v222 = vpop.permute.xlu0 %221
    %v224 = vsel %vm35, %v210, %v213
    %v225 = vsel %vm37, %v224, %v216
    %v226 = vsel %vm39, %v225, %v219
    %v227 = vsel %vm41, %v226, %v222
    %229 = vrot.lane.b32.xlu0 %v227, 35
    %v230 = vpop.permute.xlu0 %229
    %vm232 = vcmask 326936
    %233 = vst.msk [vmem:[#allocation5] sm:$0xff] %vm232, %v230
    // Predicated region
    $region10: #{tpu_custom_call.1} parent=1 // pred_check
      _
    $region11: #{tpu_custom_call.1} parent=1 // pred_check_branch
      %235 = sbr.rel (0) target = $region13
    $region12: #{tpu_custom_call.1} parent=1 // pred_region
      %s237 = ssub.s32 128, 128
      %238 = vsyncadd [#allocation4], %s237
      %s240 = sshll.u32 [#allocation5], 4
      %s241 = int_to_ptr.vmem [resolvable:$true] %s240
      %243 = dma.vmem_to_hbm [thread:$0]  %s241, 128, %s1, [#allocation4]
    $region13: #{tpu_custom_call.1} parent=1 // pred_fallthru
      _
    // Predicated region
    $region14: #{tpu_custom_call.1} parent=1 // pred_check
      _
    $region15: #{tpu_custom_call.1} parent=1 // pred_check_branch
      %245 = sbr.rel (0) target = $region17
    $region16: #{tpu_custom_call.1} parent=1 // pred_region
      %246 = dma.done [#allocation4], 128
    $region17: #{tpu_custom_call.1} parent=1 // pred_fallthru
      _
    %247 = vsyncpa [#allocation3], 1
    %248 = vsyncpa [#allocation4], 1

</llo_original>
